<compile_context>
chip_gen: v6e
topology: v6e:2x2x1
jax: 0.10.0
libtpu: 0.0.40
codegen_flags: <defaults>
</compile_context>

<pallas_src>
import functools

import jax
import jax.numpy as jnp
from jax.experimental import pallas as pl
from jax.experimental.pallas import tpu as pltpu

_LANE = 128
_MAX_BLOCK_ELEMS = 512 * 1024  # ~2 MiB per f32 buffer per array


def _gaussian_noise_kernel(x_ref, noise_ref, o_ref, *, stddev):
    # Pure elementwise VPU work; compute in the native (noise) dtype and cast
    # to the output dtype (identity for f32, keeps bf16 tiles in bf16).
    o_ref[...] = (x_ref[...] + noise_ref[...] * stddev).astype(o_ref.dtype)


def _choose_width(n):
    # Prefer a wide lane-dense slab; fall back to 128 (caller pads if needed).
    for w in (512, 256, _LANE):
        if n % w == 0:
            return w
    return _LANE


@functools.partial(jax.jit, static_argnames=("stddev", "training"))
def gaussian_noise(din, key, stddev, training=True):
    """JAX/Pallas equivalent of GaussianNoise.forward."""
    if not training:
        return din

    orig_shape = din.shape
    orig_dtype = din.dtype
    noise_dtype = (
        orig_dtype if jnp.issubdtype(orig_dtype, jnp.floating) else jnp.float32
    )

    # torch.randn(din.size()) equivalent.
    noise = jax.random.normal(key, orig_shape, dtype=noise_dtype)

    n = din.size
    w = _choose_width(n)

    x_flat = din.reshape(-1)
    n_flat = noise.reshape(-1)
    padded = pl.cdiv(n, w) * w
    if padded != n:  # rare ragged fallback; the fast path skips these copies
        pad = padded - n
        x_flat = jnp.pad(x_flat, (0, pad))
        n_flat = jnp.pad(n_flat, (0, pad))

    rows = padded // w
    x2d = x_flat.reshape(rows, w)
    n2d = n_flat.reshape(rows, w)

    # Row-block sized to ~512K elements (2 MiB f32); multiple of 8, or the
    # full row count for small inputs (block == full array dims is allowed).
    cap = max(8, _MAX_BLOCK_ELEMS // w)
    block_rows = rows if rows <= cap else cap
    grid = (pl.cdiv(rows, block_rows),)

    itemsize = jnp.dtype(noise_dtype).itemsize
    out2d = pl.pallas_call(
        functools.partial(_gaussian_noise_kernel, stddev=float(stddev)),
        out_shape=jax.ShapeDtypeStruct((rows, w), orig_dtype),
        grid=grid,
        in_specs=[
            pl.BlockSpec((block_rows, w), lambda i: (i, 0)),
            pl.BlockSpec((block_rows, w), lambda i: (i, 0)),
        ],
        out_specs=pl.BlockSpec((block_rows, w), lambda i: (i, 0)),
        compiler_params=pltpu.CompilerParams(
            dimension_semantics=("parallel",),
        ),
        cost_estimate=pl.CostEstimate(
            flops=2 * n,
            transcendentals=0,
            bytes_accessed=3 * n * itemsize,
        ),
    )(x2d, n2d)

    out_flat = out2d.reshape(-1)
    if padded != n:
        out_flat = out_flat[:n]
    return out_flat.reshape(orig_shape)


if __name__ == "__main__":
    root = jax.random.PRNGKey(0)
    data_key, noise_key = jax.random.split(root)

    # Small NCHW input consistent with a conv-style feature map.
    x = jax.random.normal(data_key, (2, 4, 16, 16), dtype=jnp.float32)
    stddev = 0.1

    # training=True path: adds Gaussian noise via the Pallas kernel.
    y_train = jax.block_until_ready(
        gaussian_noise(x, noise_key, stddev, training=True)
    )
    # training=False path: identity.
    y_eval = jax.block_until_ready(
        gaussian_noise(x, noise_key, stddev, training=False)
    )

    # Reference: din + randn(din.size()) * stddev with the same noise draw.
    ref = x + jax.random.normal(noise_key, x.shape, dtype=x.dtype) * stddev

    assert y_train.shape == x.shape and y_train.dtype == x.dtype
    assert bool(jnp.all(jnp.isfinite(y_train)))
    assert bool(jnp.allclose(y_train, ref, atol=1e-5, rtol=1e-5))
    # Noise actually changed the values (training) and eval is exact passthrough.
    assert bool(jnp.any(jnp.abs(y_train - x) > 0))
    assert bool(jnp.all(y_eval == x))
    # Rough statistical sanity on the injected noise.
    injected = y_train - x
    assert abs(float(jnp.std(injected)) - stddev) < 0.03

    print("KERNEL_OK")
</pallas_src>

<mosaic_0001>
module attributes {stable_mosaic.version = 11 : i64} {
  func.func @_gaussian_noise_kernel(%arg0: i32, %arg1: memref<4x512xf32, #tpu.memory_space<vmem>>, %arg2: memref<4x512xf32, #tpu.memory_space<vmem>>, %arg3: memref<4x512xf32, #tpu.memory_space<vmem>>) attributes {dimension_semantics = [#tpu.dimension_semantics<parallel>], iteration_bounds = array<i64: 1>, scalar_prefetch = 0 : i64, scratch_operands = 0 : i64, tpu.core_type = #tpu.core_type<tc>, window_params = [{transform_indices = @transform_0, window_bounds = array<i64: 4, 512>}, {transform_indices = @transform_1, window_bounds = array<i64: 4, 512>}, {transform_indices = @transform_2, window_bounds = array<i64: 4, 512>}]} {
    %c0 = arith.constant 0 : index
    %c0_0 = arith.constant 0 : index
    %0 = vector.load %arg1[%c0, %c0_0] : memref<4x512xf32, #tpu.memory_space<vmem>>, vector<4x512xf32>
    %c0_1 = arith.constant 0 : index
    %c0_2 = arith.constant 0 : index
    %1 = vector.load %arg2[%c0_1, %c0_2] : memref<4x512xf32, #tpu.memory_space<vmem>>, vector<4x512xf32>
    %cst = arith.constant 1.000000e-01 : f32
    %2 = vector.broadcast %cst : f32 to vector<4x512xf32>
    %3 = arith.mulf %1, %2 : vector<4x512xf32>
    %4 = arith.addf %0, %3 : vector<4x512xf32>
    %c0_3 = arith.constant 0 : index
    %c0_4 = arith.constant 0 : index
    %5 = vector.load %arg3[%c0_3, %c0_4] : memref<4x512xf32, #tpu.memory_space<vmem>>, vector<4x512xf32>
    tpu.vector_store %arg3[%c0_3, %c0_4], %4 {strides = array<i32>} : memref<4x512xf32, #tpu.memory_space<vmem>>, vector<4x512xf32>,
    return
  }
  func.func @transform_0(%arg0: i32) -> (i32, i32) {
    %c0_i32 = arith.constant 0 : i32
    %c0_i32_0 = arith.constant 0 : i32
    return %arg0, %c0_i32 : i32, i32
  }
  func.func @transform_1(%arg0: i32) -> (i32, i32) {
    %c0_i32 = arith.constant 0 : i32
    %c0_i32_0 = arith.constant 0 : i32
    return %arg0, %c0_i32 : i32, i32
  }
  func.func @transform_2(%arg0: i32) -> (i32, i32) {
    %c0_i32 = arith.constant 0 : i32
    %c0_i32_0 = arith.constant 0 : i32
    return %arg0, %c0_i32 : i32, i32
  }
}

</mosaic_0001>

<llo_original>
// kernel: gaussian_noise.1
$region0: #{gaussian_noise.1}
  #allocation0 [shape = 'u32[]', space=smem, size = 0x4, offset = 0x4, fixed_abs, tag = 'smem constant byte address 0x4 - core index']
  #allocation1 [shape = 'u32[144,128]{1,0:T(1,128)}', space=vmem, size = 0x12000, scoped, tag = 'internal scratch']
  %s0 = inlined_call_operand.vmem [shape: f32[4,512], index: 0, kind: input, shape index: {}]
  %s1 = inlined_call_operand.vmem [shape: f32[4,512], index: 1, kind: input, shape index: {}]
  %s2 = inlined_call_operand.vmem [shape: f32[4,512], index: 2, kind: output, shape index: {}]
  %s3 = sld [smem:[#allocation0]]
  $region18: #{gaussian_noise.1} parent=0
    _
  %s5 = ssub.s32 1, %s3
  %s6 = scalar_select 0, %s5, %s3
  // Predicated region
  $region2: #{gaussian_noise.1} parent=0 // pred_check
    _
  $region3: #{gaussian_noise.1} parent=0 // pred_check_branch
    %8 = sbr.rel (0) target = $region5
  $region4: #{gaussian_noise.1} parent=0 // pred_region
    _
  $region5: #{gaussian_noise.1} parent=0 // pred_fallthru
    _
  // Predicated region
  $region6: #{gaussian_noise.1} parent=0 // pred_check
    _
  $region7: #{gaussian_noise.1} parent=0 // pred_check_branch
    %10 = sbr.rel (0) target = $region9
  $region8: #{gaussian_noise.1} parent=0 // pred_region
    _
  $region9: #{gaussian_noise.1} parent=0 // pred_fallthru
    _
  %v11 = vld [vmem:[%s0] sm:$0xff]
  %v12 = vld [vmem:[%s0 + $0x8] sm:$0xff]
  %v13 = vld [vmem:[%s1] sm:$0xff]
  %v14 = vld [vmem:[%s1 + $0x8] sm:$0xff]
  %v15 = vmul.f32 %v13, 0.1
  %v16 = vmul.f32 %v14, 0.1
  %v17 = vadd.f32 %v11, %v15
  %v18 = vadd.f32 %v12, %v16
  %19 = vst [vmem:[%s2] sm:$0xff] %v17
  %20 = vst [vmem:[%s2 + $0x8] sm:$0xff] %v18
  // Predicated region
  $region10: #{gaussian_noise.1} parent=0 // pred_check
    _
  $region11: #{gaussian_noise.1} parent=0 // pred_check_branch
    %22 = sbr.rel (0) target = $region13
  $region12: #{gaussian_noise.1} parent=0 // pred_region
    _
  $region13: #{gaussian_noise.1} parent=0 // pred_fallthru
    _
  // Predicated region
  $region14: #{gaussian_noise.1} parent=0 // pred_check
    _
  $region15: #{gaussian_noise.1} parent=0 // pred_check_branch
    %24 = sbr.rel (0) target = $region17
  $region16: #{gaussian_noise.1} parent=0 // pred_region
    _
  $region17: #{gaussian_noise.1} parent=0 // pred_fallthru
    _

</llo_original>
